<compile_context>
chip_gen: v7x
topology: tpu7x:2x2x1
jax: 0.10.0
libtpu: 0.0.40
codegen_flags: <defaults>
</compile_context>

<pallas_src>
import functools

import jax
import jax.numpy as jnp
import numpy as np
from jax.experimental import pallas as pl
from jax.experimental.pallas import tpu as pltpu

LANE = 128
SUBLANE = 8


def _round_up(x, m):
    return (x + m - 1) // m * m


def _vmem_budget_bytes():
    """Per-generation VMEM budget (leave headroom under physical capacity)."""
    cap = 64 * 1024 * 1024           # conservative default (v7x per-TC VMEM)
    try:
        info = pltpu.get_tpu_info()
        cap = int(getattr(info, "vmem_capacity_bytes", cap))
    except Exception:
        pass
    return max(int(cap * 0.6), 16 * 1024 * 1024)


def _make_kernel(*, TOH, TOH_C, OWP, KH, KW, stride, R, HALO, CINP, COUTP,
                 has_act):
    """Conv kernel over grid (N, R); R = number of output-row tiles/image."""
    n_chunks = TOH // TOH_C

    def kernel(x_hbm, w_ref, bias_ref, o_ref, xbuf, sem):
        # x_hbm:    (N, Hp, Wp, CINP)      padded NHWC input, resident in HBM
        # w_ref:    (KH*KW, CINP, COUTP)   per-tap weights (BN scale folded in)
        # bias_ref: (1, COUTP)             folded BN bias (or conv bias), f32
        # o_ref:    (1, TOH, OWP, COUTP)   output row tile (compute dtype)
        # xbuf:     (2, HALO, Wp, CINP)    VMEM double buffer for the halo rows
        # sem:      (2,)                   DMA semaphores
        n = pl.program_id(0)
        r = pl.program_id(1)

        def issue(rr, slot):
            row0 = rr * (TOH * stride)
            pltpu.make_async_copy(
                x_hbm.at[n, pl.ds(row0, HALO), :, :],
                xbuf.at[slot],
                sem.at[slot],
            ).start()

        # Prime the pipeline at the first row tile of every image.
        @pl.when(r == 0)
        def _():
            issue(0, 0)

        slot = r % 2

        # Prefetch the next row tile's halo while we compute on this one
        # (within the same image only; the batch axis may be megacore-split).
        if R > 1:
            @pl.when(r + 1 < R)
            def _():
                issue(r + 1, 1 - slot)

        # Wait for this tile's DMA, reconstructed from the exact same slice.
        row0 = r * (TOH * stride)
        pltpu.make_async_copy(
            x_hbm.at[n, pl.ds(row0, HALO), :, :],
            xbuf.at[slot],
            sem.at[slot],
        ).wait()

        bias = bias_ref[...]                                   # (1, COUTP) f32

        # Process the tile in row chunks so the f32 accumulator stays small.
        for c in range(n_chunks):
            acc = jnp.zeros((TOH_C * OWP, COUTP), jnp.float32)
            for kh in range(KH):
                for kw in range(KW):
                    r0 = (c * TOH_C) * stride + kh
                    if stride == 1:
                        patch = xbuf[slot, r0:r0 + TOH_C, kw:kw + OWP, :]
                    else:
                        band = xbuf[slot,
                                    r0:r0 + (TOH_C - 1) * stride + 1,
                                    kw:kw + (OWP - 1) * stride + 1, :]
                        patch = band[::stride, ::stride, :]
                    patch = patch.reshape(TOH_C * OWP, CINP)
                    acc = acc + jnp.dot(patch, w_ref[kh * KW + kw],
                                        preferred_element_type=jnp.float32)
            acc = acc + bias
            if has_act:
                acc = jnp.maximum(acc, 0.0)
            o_ref[0, c * TOH_C:(c + 1) * TOH_C, :, :] = (
                acc.reshape(TOH_C, OWP, COUTP).astype(o_ref.dtype))

    return kernel


def conv_bn_act_block(x_nchw, params, *, stride, padding, groups=1,
                      has_bn=True, has_act=True, eps=1e-5,
                      compute_dtype=jnp.bfloat16, use_tap_packing=True):
    """Forward pass of ConvBnActBlock.  x_nchw: (N, Cin, H, W) float32.

    Returns NCHW float32 output (matches the PyTorch module, eval-mode BN).
    """
    assert groups == 1, "TODO(synk): grouped convolution not implemented"
    w = params["conv_weight"]                      # (COUT, CIN, KH, KW)
    COUT, CIN, KH, KW = w.shape
    N, C, H, W = x_nchw.shape
    assert C == CIN

    OH = (H + 2 * padding - KH) // stride + 1
    OW = (W + 2 * padding - KW) // stride + 1

    # ---- fold eval-mode BN into the conv weights / bias (host side) --------
    if has_bn:
        scale = params["bn_gamma"] * jax.lax.rsqrt(params["bn_var"] + eps)
        bias = params["bn_beta"] - params["bn_mean"] * scale
    else:
        scale = jnp.ones((COUT,), jnp.float32)
        bias = params.get("conv_bias", jnp.zeros((COUT,), jnp.float32))
    w_hwio = jnp.transpose(w, (2, 3, 1, 0)) * scale[None, None, None, :]

    x_nhwc = jnp.transpose(x_nchw, (0, 2, 3, 1))    # (N, H, W, CIN)

    # ---- small-CIN fast path: pack all KH*KW taps into the K dimension -----
    if use_tap_packing and KH * KW * CIN <= LANE:
        xp = jnp.pad(x_nhwc, ((0, 0), (padding, padding),
                              (padding, padding), (0, 0)))
        cols = []
        for kh in range(KH):
            for kw in range(KW):
                cols.append(xp[:, kh:kh + (OH - 1) * stride + 1:stride,
                               kw:kw + (OW - 1) * stride + 1:stride, :])
        x_eff = jnp.concatenate(cols, axis=-1)      # (N, OH, OW, KH*KW*CIN)
        w_eff = w_hwio.reshape(1, 1, KH * KW * CIN, COUT)
        KHe = KWe = 1
        stride_e, pad_e = 1, 0
        CIN_e = KH * KW * CIN
    else:
        x_eff, w_eff = x_nhwc, w_hwio
        KHe, KWe = KH, KW
        stride_e, pad_e = stride, padding
        CIN_e = CIN

    _, H_e, W_e, _ = x_eff.shape

    # ---- tiling policy ------------------------------------------------------
    CINP = _round_up(CIN_e, LANE)
    COUTP = _round_up(COUT, LANE)
    OWP = _round_up(OW, SUBLANE)

    itemsize = jnp.dtype(compute_dtype).itemsize
    Hp = H_e + 2 * pad_e
    Wp = W_e + 2 * pad_e
    Wp_pad = max(Wp, (OWP - 1) * stride_e + KWe)

    # Row-chunk size: keep the f32 accumulator at <= ~32 vregs.
    m_cap = max(SUBLANE, (32 * 4096) // (COUTP * 4))
    TOH_C = max(1, min(OH, m_cap // OWP))

    # Row tile: target ~512 output pixels per grid step, VMEM-budget bounded.
    M_TARGET = 512
    n_chunks_total = -(-OH // TOH_C)
    chunks = max(1, min(n_chunks_total, M_TARGET // (TOH_C * OWP)))

    budget = _vmem_budget_bytes()

    def working_set(toh):
        halo = (toh - 1) * stride_e + KHe
        xb = 2 * halo * Wp_pad * CINP * itemsize          # halo double buffer
        wt = 2 * KHe * KWe * CINP * COUTP * itemsize      # weights (2 bufs)
        ob = 2 * toh * OWP * COUTP * itemsize             # output block (2 bufs)
        ac = 2 * TOH_C * OWP * COUTP * 4                  # acc + operand slack
        return xb + wt + ob + ac + (2 * COUTP * 4)

    while chunks > 1 and working_set(chunks * TOH_C) > budget:
        chunks -= 1
    TOH = chunks * TOH_C
    if working_set(TOH) > budget:
        raise ValueError(
            "ConvBnActBlock: per-step VMEM working set "
            f"({working_set(TOH)} B) exceeds the budget ({budget} B).")

    R = -(-OH // TOH)
    HALO = (TOH - 1) * stride_e + KHe
    Hp_pad = max(Hp, (R - 1) * TOH * stride_e + HALO)

    # ---- host-side glue (fused by XLA under jit): pad + cast ---------------
    x_pad = jnp.pad(
        x_eff,
        ((0, 0),
         (pad_e, pad_e + (Hp_pad - Hp)),
         (pad_e, pad_e + (Wp_pad - Wp)),
         (0, CINP - CIN_e)),
    ).astype(compute_dtype)                        # (N, Hp_pad, Wp_pad, CINP)

    w_taps = jnp.pad(w_eff, ((0, 0), (0, 0),
                             (0, CINP - CIN_e), (0, COUTP - COUT)))
    w_taps = w_taps.reshape(KHe * KWe, CINP, COUTP).astype(compute_dtype)
    bias_p = jnp.pad(bias, (0, COUTP - COUT)).reshape(1, COUTP).astype(
        jnp.float32)

    kernel = _make_kernel(TOH=TOH, TOH_C=TOH_C, OWP=OWP, KH=KHe, KW=KWe,
                          stride=stride_e, R=R, HALO=HALO, CINP=CINP,
                          COUTP=COUTP, has_act=has_act)

    # Advisory cost estimate: padded dims, actual DMA'd bytes (halo re-read).
    flops = 2 * N * R * TOH * OWP * KHe * KWe * CINP * COUTP
    bytes_accessed = (N * R * HALO * Wp_pad * CINP * itemsize     # input DMAs
                      + KHe * KWe * CINP * COUTP * itemsize       # weights
                      + COUTP * 4                                 # bias
                      + N * R * TOH * OWP * COUTP * itemsize)     # output

    out = pl.pallas_call(
        kernel,
        out_shape=jax.ShapeDtypeStruct((N, R * TOH, OWP, COUTP), compute_dtype),
        grid=(N, R),
        in_specs=[
            pl.BlockSpec(memory_space=pl.ANY),                     # x in HBM
            pl.BlockSpec((KHe * KWe, CINP, COUTP), lambda n, r: (0, 0, 0)),
            pl.BlockSpec((1, COUTP), lambda n, r: (0, 0)),
        ],
        out_specs=pl.BlockSpec((1, TOH, OWP, COUTP),
                               lambda n, r: (n, r, 0, 0)),
        scratch_shapes=[
            pltpu.VMEM((2, HALO, Wp_pad, CINP), compute_dtype),
            pltpu.SemaphoreType.DMA((2,)),
        ],
        compiler_params=pltpu.CompilerParams(
            dimension_semantics=("parallel", "arbitrary"),
            vmem_limit_bytes=budget,
        ),
        cost_estimate=pl.CostEstimate(flops=flops, transcendentals=0,
                                      bytes_accessed=bytes_accessed),
    )(x_pad, w_taps, bias_p)

    out = out[:, :OH, :OW, :COUT].astype(jnp.float32)   # drop padding, upcast
    return jnp.transpose(out, (0, 3, 1, 2))             # back to NCHW


def _reference(x_nchw, params, *, stride, padding, has_bn=True, has_act=True,
               eps=1e-5):
    """Pure-JAX reference (lax conv) for correctness checks."""
    w = params["conv_weight"]
    y = jax.lax.conv_general_dilated(
        x_nchw, w, window_strides=(stride, stride),
        padding=((padding, padding), (padding, padding)),
        dimension_numbers=("NCHW", "OIHW", "NCHW"),
        precision=jax.lax.Precision.HIGHEST)
    if has_bn:
        scale = params["bn_gamma"] / jnp.sqrt(params["bn_var"] + eps)
        bias = params["bn_beta"] - params["bn_mean"] * scale
        y = y * scale[None, :, None, None] + bias[None, :, None, None]
    if has_act:
        y = jnp.maximum(y, 0.0)
    return y


if __name__ == "__main__":
    # Small shapes consistent with the module: ConvBnActBlock(4, 8, 3, 1, 1)
    N, CIN, H, W = 2, 4, 16, 16
    COUT, K, STRIDE, PAD = 8, 3, 1, 1

    key = jax.random.PRNGKey(0)
    k1, k2, k3, k4, k5, k6 = jax.random.split(key, 6)

    x = jax.random.normal(k1, (N, CIN, H, W), dtype=jnp.float32)
    params = {
        "conv_weight": jax.random.normal(k2, (COUT, CIN, K, K), jnp.float32) * 0.1,
        "bn_gamma": jax.random.uniform(k3, (COUT,), jnp.float32, 0.5, 1.5),
        "bn_beta": jax.random.normal(k4, (COUT,), jnp.float32) * 0.1,
        "bn_mean": jax.random.normal(k5, (COUT,), jnp.float32) * 0.1,
        "bn_var": jax.random.uniform(k6, (COUT,), jnp.float32, 0.5, 1.5),
    }

    ref = _reference(x, params, stride=STRIDE, padding=PAD,
                     has_bn=True, has_act=True)

    # f32 path, small-CIN tap-packing route (structural check; tolerance covers
    # the TPU's default reduced-precision matmul on f32 inputs).
    fwd_f32 = functools.partial(conv_bn_act_block, stride=STRIDE, padding=PAD,
                                compute_dtype=jnp.float32)
    out_f32 = jax.block_until_ready(jax.jit(fwd_f32)(x, params))
    np.testing.assert_allclose(np.asarray(out_f32), np.asarray(ref),
                               rtol=1e-2, atol=1e-2)

    # f32 path, generic per-tap route (exercises the halo DMA + tap loop).
    fwd_gen = functools.partial(conv_bn_act_block, stride=STRIDE, padding=PAD,
                                compute_dtype=jnp.float32,
                                use_tap_packing=False)
    out_gen = jax.block_until_ready(jax.jit(fwd_gen)(x, params))
    np.testing.assert_allclose(np.asarray(out_gen), np.asarray(ref),
                               rtol=1e-2, atol=1e-2)

    # bf16 path (the performance default): looser tolerance for bf16 inputs.
    fwd_bf16 = functools.partial(conv_bn_act_block, stride=STRIDE, padding=PAD,
                                 compute_dtype=jnp.bfloat16)
    out_bf16 = jax.block_until_ready(jax.jit(fwd_bf16)(x, params))
    np.testing.assert_allclose(np.asarray(out_bf16), np.asarray(ref),
                               rtol=5e-2, atol=5e-2)

    assert out_f32.shape == (N, COUT, H, W)
    print("KERNEL_OK")
</pallas_src>

<mosaic_0001>
module attributes {stable_mosaic.version = 11 : i64} {
  func.func @kernel(%arg0: i32, %arg1: i32, %arg2: memref<2x16x16x128xf32, #tpu.memory_space<any>>, %arg3: memref<1x128x128xf32, #tpu.memory_space<vmem>>, %arg4: memref<1x128xf32, #tpu.memory_space<vmem>>, %arg5: memref<1x16x16x128xf32, #tpu.memory_space<vmem>>, %arg6: memref<2x16x16x128xf32, #tpu.memory_space<vmem>>, %arg7: memref<2x!tpu.dma_semaphore, #tpu.memory_space<semaphore_mem>>) attributes {dimension_semantics = [#tpu.dimension_semantics<parallel>, #tpu.dimension_semantics<arbitrary>], iteration_bounds = array<i64: 2, 1>, scalar_prefetch = 0 : i64, scratch_operands = 2 : i64, tpu.core_type = #tpu.core_type<tc>, window_params = [{}, {pipeline_mode = #tpu.pipeline_mode<synchronous>, transform_indices = @transform_1, window_bounds = array<i64: 1, 128, 128>}, {pipeline_mode = #tpu.pipeline_mode<synchronous>, transform_indices = @transform_2, window_bounds = array<i64: 1, 128>}, {transform_indices = @transform_3, window_bounds = array<i64: 1, 16, 16, 128>}]} {
    %c0_i32 = arith.constant 0 : i32
    %0 = arith.cmpi eq, %arg1, %c0_i32 : i32
    %1 = arith.extui %0 : i1 to i32
    %c0_i32_0 = arith.constant 0 : i32
    %2 = arith.cmpi ne, %1, %c0_i32_0 : i32
    scf.if %2 {
      %c0_i32_23 = arith.constant 0 : i32
      %c0_i32_24 = arith.constant 0 : i32
      %c0_i32_25 = arith.constant 0 : i32
      %c0_i32_26 = arith.constant 0 : i32
      %c0_i32_27 = arith.constant 0 : i32
      %38 = tpu.memref_slice %arg2[%arg0, %c0_i32_25, %c0_i32_26, %c0_i32_27] : memref<2x16x16x128xf32, #tpu.memory_space<any>> -> memref<1x16x16x128xf32, #tpu.memory_space<any>>
      %39 = tpu.memref_squeeze %38 : memref<1x16x16x128xf32, #tpu.memory_space<any>> -> memref<16x16x128xf32, #tpu.memory_space<any>>
      %c0_i32_28 = arith.constant 0 : i32
      %c0_i32_29 = arith.constant 0 : i32
      %c0_i32_30 = arith.constant 0 : i32
      %40 = tpu.memref_slice %arg6[%c0_i32_23, %c0_i32_28, %c0_i32_29, %c0_i32_30] : memref<2x16x16x128xf32, #tpu.memory_space<vmem>> -> memref<1x16x16x128xf32, #tpu.memory_space<vmem>>
      %41 = tpu.memref_squeeze %40 : memref<1x16x16x128xf32, #tpu.memory_space<vmem>> -> memref<16x16x128xf32, #tpu.memory_space<vmem>>
      %42 = tpu.memref_slice %arg7[%c0_i32_24] : memref<2x!tpu.dma_semaphore, #tpu.memory_space<semaphore_mem>> -> memref<1x!tpu.dma_semaphore, #tpu.memory_space<semaphore_mem>>
      %43 = tpu.memref_squeeze %42 : memref<1x!tpu.dma_semaphore, #tpu.memory_space<semaphore_mem>> -> memref<!tpu.dma_semaphore, #tpu.memory_space<semaphore_mem>>
      tpu.enqueue_dma source(%39 : memref<16x16x128xf32, #tpu.memory_space<any>>) target(%41 : memref<16x16x128xf32, #tpu.memory_space<vmem>>) target_semaphore(%43 : memref<!tpu.dma_semaphore, #tpu.memory_space<semaphore_mem>>)
    } else {
    }
    %c2_i32 = arith.constant 2 : i32
    %c0_i32_1 = arith.constant 0 : i32
    %3 = arith.cmpi eq, %c2_i32, %c0_i32_1 : i32
    %c1_i32 = arith.constant 1 : i32
    %4 = arith.select %3, %c1_i32, %c2_i32 : i32
    %5 = arith.remsi %arg1, %4 : i32
    %c0_i32_2 = arith.constant 0 : i32
    %6 = arith.cmpi ne, %5, %c0_i32_2 : i32
    %c0_i32_3 = arith.constant 0 : i32
    %7 = arith.cmpi slt, %5, %c0_i32_3 : i32
    %c0_i32_4 = arith.constant 0 : i32
    %8 = arith.cmpi slt, %4, %c0_i32_4 : i32
    %9 = arith.xori %7, %8 : i1
    %10 = arith.andi %9, %6 : i1
    %11 = arith.addi %5, %4 : i32
    %12 = arith.select %10, %11, %5 : i32
    %c16_i32 = arith.constant 16 : i32
    %13 = arith.muli %arg1, %c16_i32 : i32
    %c0_i32_5 = arith.constant 0 : i32
    %c0_i32_6 = arith.constant 0 : i32
    %14 = tpu.memref_slice %arg2[%arg0, %13, %c0_i32_5, %c0_i32_6] : memref<2x16x16x128xf32, #tpu.memory_space<any>> -> memref<1x16x16x128xf32, #tpu.memory_space<any>>
    %15 = tpu.memref_squeeze %14 : memref<1x16x16x128xf32, #tpu.memory_space<any>> -> memref<16x16x128xf32, #tpu.memory_space<any>>
    %c0_i32_7 = arith.constant 0 : i32
    %c0_i32_8 = arith.constant 0 : i32
    %c0_i32_9 = arith.constant 0 : i32
    %16 = tpu.memref_slice %arg6[%12, %c0_i32_7, %c0_i32_8, %c0_i32_9] : memref<2x16x16x128xf32, #tpu.memory_space<vmem>> -> memref<1x16x16x128xf32, #tpu.memory_space<vmem>>
    %17 = tpu.memref_squeeze %16 : memref<1x16x16x128xf32, #tpu.memory_space<vmem>> -> memref<16x16x128xf32, #tpu.memory_space<vmem>>
    %18 = tpu.memref_slice %arg7[%12] : memref<2x!tpu.dma_semaphore, #tpu.memory_space<semaphore_mem>> -> memref<1x!tpu.dma_semaphore, #tpu.memory_space<semaphore_mem>>
    %19 = tpu.memref_squeeze %18 : memref<1x!tpu.dma_semaphore, #tpu.memory_space<semaphore_mem>> -> memref<!tpu.dma_semaphore, #tpu.memory_space<semaphore_mem>>
    tpu.wait_dma2 semaphore(%19 : memref<!tpu.dma_semaphore, #tpu.memory_space<semaphore_mem>>) src(%15 : memref<16x16x128xf32, #tpu.memory_space<any>>) dst(%17 : memref<16x16x128xf32, #tpu.memory_space<vmem>>)
    %c0 = arith.constant 0 : index
    %c0_10 = arith.constant 0 : index
    %20 = vector.load %arg4[%c0, %c0_10] : memref<1x128xf32, #tpu.memory_space<vmem>>, vector<1x128xf32>
    %cst = arith.constant 0.000000e+00 : f32
    %21 = vector.broadcast %cst : f32 to vector<256x128xf32>
    %22 = arith.index_cast %12 : i32 to index
    %c0_11 = arith.constant 0 : index
    %c0_12 = arith.constant 0 : index
    %c0_13 = arith.constant 0 : index
    %23 = vector.load %arg6[%22, %c0_11, %c0_12, %c0_13] : memref<2x16x16x128xf32, #tpu.memory_space<vmem>>, vector<1x16x16x128xf32>
    %24 = vector.shape_cast %23 : vector<1x16x16x128xf32> to vector<16x16x128xf32>
    %25 = vector.shape_cast %24 : vector<16x16x128xf32> to vector<256x128xf32>
    %c0_14 = arith.constant 0 : index
    %c0_15 = arith.constant 0 : index
    %c0_16 = arith.constant 0 : index
    %26 = vector.load %arg3[%c0_14, %c0_15, %c0_16] : memref<1x128x128xf32, #tpu.memory_space<vmem>>, vector<1x128x128xf32>
    %27 = vector.shape_cast %26 : vector<1x128x128xf32> to vector<128x128xf32>
    %cst_17 = arith.constant dense<0.000000e+00> : vector<256x128xf32>
    %28 = tpu.matmul %25, %27, %cst_17 {dimension_numbers = #tpu.dot_dimension_numbers<[1], [0], [0], [1], [0, 0, 1, 1], [], []>} : vector<256x128xf32>, vector<128x128xf32>, vector<256x128xf32> -> vector<256x128xf32>
    %29 = arith.addf %21, %28 : vector<256x128xf32>
    %30 = vector.broadcast %20 : vector<1x128xf32> to vector<256x128xf32>
    %31 = arith.addf %29, %30 : vector<256x128xf32>
    %cst_18 = arith.constant 0.000000e+00 : f32
    %32 = vector.broadcast %cst_18 : f32 to vector<256x128xf32>
    %33 = arith.maximumf %31, %32 : vector<256x128xf32>
    %34 = vector.shape_cast %33 : vector<256x128xf32> to vector<16x16x128xf32>
    %c0_19 = arith.constant 0 : index
    %c0_20 = arith.constant 0 : index
    %c0_21 = arith.constant 0 : index
    %c0_22 = arith.constant 0 : index
    %35 = vector.load %arg5[%c0_19, %c0_20, %c0_21, %c0_22] : memref<1x16x16x128xf32, #tpu.memory_space<vmem>>, vector<1x16x16x128xf32>
    %36 = vector.shape_cast %35 : vector<1x16x16x128xf32> to vector<16x16x128xf32>
    %37 = vector.shape_cast %34 : vector<16x16x128xf32> to vector<1x16x16x128xf32>
    tpu.vector_store %arg5[%c0_19, %c0_20, %c0_21, %c0_22], %37 {strides = array<i32>} : memref<1x16x16x128xf32, #tpu.memory_space<vmem>>, vector<1x16x16x128xf32>,
    return
  }
  func.func @transform_1(%arg0: i32, %arg1: i32) -> (i32, i32, i32) {
    %c0_i32 = arith.constant 0 : i32
    %c0_i32_0 = arith.constant 0 : i32
    %c0_i32_1 = arith.constant 0 : i32
    %c0_i32_2 = arith.constant 0 : i32
    return %c0_i32, %c0_i32_0, %c0_i32_1 : i32, i32, i32
  }
  func.func @transform_2(%arg0: i32, %arg1: i32) -> (i32, i32) {
    %c0_i32 = arith.constant 0 : i32
    %c0_i32_0 = arith.constant 0 : i32
    %c0_i32_1 = arith.constant 0 : i32
    return %c0_i32, %c0_i32_0 : i32, i32
  }
  func.func @transform_3(%arg0: i32, %arg1: i32) -> (i32, i32, i32, i32) {
    %c0_i32 = arith.constant 0 : i32
    %c0_i32_0 = arith.constant 0 : i32
    %c0_i32_1 = arith.constant 0 : i32
    return %arg0, %arg1, %c0_i32, %c0_i32_0 : i32, i32, i32, i32
  }
}

</mosaic_0001>

<llo_original>
// kernel: conv_bn_act_block.1
$region0: #{conv_bn_act_block.1}
  #allocation0 [shape = 'u32[]', space=smem, size = 0x4, offset = 0x4, fixed_abs, tag = 'smem constant byte address 0x4 - core index']
  #allocation1 [shape = 'u32[144,128]{1,0:T(1,128)}', space=vmem, size = 0x12000, scoped, tag = 'internal scratch']
  #allocation2 [shape = 'f32[2,16,16,128]{3,2,1,0:T(8,128)}', space=vmem, size = 0x40000, scoped, tag = 'scratch operand']
  #allocation3 [shape = 's32[2]{0}', space=sflag, size = 0x8, scoped, tag = 'scratch operand']
  #allocation4 [shape = 's32[]', space=sflag, size = 0x4, offset = 0, fixed_abs, tag = 'sflag constant byte address 0x0 - dummy sync flag']
  %s0 = inlined_call_operand.vmem [shape: f32[2,16,16,128], index: 0, kind: input, shape index: {}]
  %s1 = inlined_call_operand.vmem [shape: f32[1,128,128], index: 1, kind: input, shape index: {}]
  %s2 = inlined_call_operand.vmem [shape: f32[1,128], index: 2, kind: input, shape index: {}]
  %s3 = inlined_call_operand.vmem [shape: f32[2,16,16,128], index: 3, kind: output, shape index: {}]
  %s4 = sld [smem:[#allocation0]]
  $region79: #{conv_bn_act_block.1} parent=0
    _
  %s6 = ssub.s32 1, %s4
  %s7 = scalar_select 0, %s6, %s4
  loop: start=0, step=1, limit=4
  $region2: #{conv_bn_act_block.1} parent=0 // loop_pre_header
    _
  $region3: #{conv_bn_act_block.1} parent=0 // loop_header
    %s9 = sphi 0, %s13
    %p10 = scmp.ge.s32.totalorder %s9, 4
    %s16 = sphi 0, %s28
    %s17 = sphi 0, %s24
    %s18 = sphi 0, %s16
    %s19 = sphi 0, %s17
    %s20 = sphi 0, %s18
    %s21 = sphi 0, %s19
    %s29 = sphi 0, %s29
    %s31 = sphi 0, %s29
    %s32 = sphi 0, %s31
    %s46 = sphi 0, %s32
    %s50 = sphi 0, %s50
    %s52 = sphi 0, %s50
    %s53 = sphi 0, %s52
    %s67 = sphi 0, %s53
    %s75 = sphi 0, %s77
    %s78 = sphi 0, %s75
    %s79 = sphi 0, %s78
    %s95 = sphi 0, %s79
  $region4: #{conv_bn_act_block.1} parent=0 // loop_header_branch
    %12 = sbr.rel (%p10) target = $region8
  $region5: #{conv_bn_act_block.1} parent=0 // loop_body
    %s14 = ssub.s32 %s9, 1
    %s15 = ssub.s32 %s9, 2
    %s22 = sadd.s32 1, %s17
    %p23 = scmp.ge.s32.totalorder %s22, 1
    %s24 = scalar_select %p23, 0, %s22
    %s25 = sadd.s32 1, %s16
    %s26 = scalar_select %p23, %s25, %s16
    %p27 = scmp.ge.s32.totalorder %s26, 2
    %s28 = scalar_select %p27, 0, %s26
    %s30 = sadd.s32 %s29, 1
    %p33 = scmp.eq.s32.totalorder %s9, 1
    %p34 = scmp.ne.s32.totalorder %s29, %s31
    %p35 = scmp.eq.s32.totalorder %s9, 0
    %p36 = por %p34, %p35
    %p37 = scmp.ne.s32.totalorder %s29, %s31
    %p38 = scmp.eq.s32.totalorder %s14, 1
    %p39 = por %p37, %p38
    %p40 = scmp.ne.s32.totalorder %s31, %s32
    %p41 = scmp.eq.s32.totalorder %s14, 0
    %p42 = por %p40, %p41
    %p43 = scmp.ne.s32.totalorder %s31, %s32
    %p44 = scmp.eq.s32.totalorder %s15, 1
    %p45 = por %p43, %p44
    %p47 = scmp.ne.s32.totalorder %s32, %s46
    %p48 = scmp.eq.s32.totalorder %s15, 0
    %p49 = por %p47, %p48
    %s51 = sadd.s32 %s50, 1
    %p54 = scmp.eq.s32.totalorder %s9, 1
    %p55 = scmp.ne.s32.totalorder %s50, %s52
    %p56 = scmp.eq.s32.totalorder %s9, 0
    %p57 = por %p55, %p56
    %p58 = scmp.ne.s32.totalorder %s50, %s52
    %p59 = scmp.eq.s32.totalorder %s14, 1
    %p60 = por %p58, %p59
    %p61 = scmp.ne.s32.totalorder %s52, %s53
    %p62 = scmp.eq.s32.totalorder %s14, 0
    %p63 = por %p61, %p62
    %p64 = scmp.ne.s32.totalorder %s52, %s53
    %p65 = scmp.eq.s32.totalorder %s15, 1
    %p66 = por %p64, %p65
    %p68 = scmp.ne.s32.totalorder %s53, %s67
    %p69 = scmp.eq.s32.totalorder %s15, 0
    %p70 = por %p68, %p69
    %s71 = ssub.s32 %s16, %s28
    %s72 = ssub.s32 %s17, %s24
    %s73 = sor.u32 %s71, %s72
    %p74 = scmp.eq.s32.totalorder %s73, 0
    %s76 = sadd.s32 %s75, 1
    %s77 = scalar_select %p74, %s75, %s76
    %p80 = pneg %p74
    %p81 = scmp.eq.s32.totalorder %s9, 1
    %p82 = por %p80, %p81
    %p83 = scmp.ne.s32.totalorder %s75, %s78
    %p84 = scmp.eq.s32.totalorder %s9, 0
    %p85 = por %p83, %p84
    %p86 = scmp.ne.s32.totalorder %s75, %s78
    %p87 = scmp.eq.s32.totalorder %s14, 1
    %p88 = por %p86, %p87
    %p89 = scmp.ne.s32.totalorder %s78, %s79
    %p90 = scmp.eq.s32.totalorder %s14, 0
    %p91 = por %p89, %p90
    %p92 = scmp.ne.s32.totalorder %s78, %s79
    %p93 = scmp.eq.s32.totalorder %s15, 1
    %p94 = por %p92, %p93
    %p96 = scmp.ne.s32.totalorder %s79, %s95
    %p97 = scmp.eq.s32.totalorder %s15, 0
    %p98 = por %p96, %p97
    %p99 = scmp.le.s32.totalorder 1, %s9
    %p100 = scmp.lt.s32.totalorder %s9, 3
    %p101 = pnand %p99, %p100
    %p102 = pneg %p101
    // Predicated region
    $region9: #{conv_bn_act_block.1} parent=5 // pred_check
      _
    $region10: #{conv_bn_act_block.1} parent=5 // pred_check_branch
      %104 = sbr.rel (%p101) target = $region12
    $region11: #{conv_bn_act_block.1} parent=5 // pred_region
      %s105 = ssub.s32 %s9, 1
      // Predicated region
      $region13: #{conv_bn_act_block.1} parent=11 // pred_check
        %p106 = pneg %p42
      $region14: #{conv_bn_act_block.1} parent=11 // pred_check_branch
        %108 = sbr.rel (%p106) target = $region16
      $region15: #{conv_bn_act_block.1} parent=11 // pred_region
        _
      $region16: #{conv_bn_act_block.1} parent=11 // pred_fallthru
        _
      // Predicated region
      $region17: #{conv_bn_act_block.1} parent=11 // pred_check
        %p109 = pneg %p63
      $region18: #{conv_bn_act_block.1} parent=11 // pred_check_branch
        %111 = sbr.rel (%p109) target = $region20
      $region19: #{conv_bn_act_block.1} parent=11 // pred_region
        _
      $region20: #{conv_bn_act_block.1} parent=11 // pred_fallthru
        _
    $region12: #{conv_bn_act_block.1} parent=5 // pred_fallthru
      _
    %p112 = scmp.lt.s32.totalorder %s9, 2
    // Predicated region
    $region21: #{conv_bn_act_block.1} parent=5 // pred_check
      %p113 = pneg %p112
    $region22: #{conv_bn_act_block.1} parent=5 // pred_check_branch
      %115 = sbr.rel (%p113) target = $region24
    $region23: #{conv_bn_act_block.1} parent=5 // pred_region
      _
    $region24: #{conv_bn_act_block.1} parent=5 // pred_fallthru
      _
    %p116 = scmp.le.s32.totalorder 1, %s9
    %p117 = scmp.lt.s32.totalorder %s9, 3
    %p118 = pnand %p116, %p117
    %p119 = pneg %p118
    // Predicated region
    $region25: #{conv_bn_act_block.1} parent=5 // pred_check
      _
    $region26: #{conv_bn_act_block.1} parent=5 // pred_check_branch
      %121 = sbr.rel (%p118) target = $region28
    $region27: #{conv_bn_act_block.1} parent=5 // pred_region
      %s122 = ssub.s32 %s9, 1
      %p123 = pneg %p42
      %p124 = pneg %p39
      %p125 = pneg %p63
      %p126 = pneg %p60
      %p127 = pneg %p91
      %p128 = pneg %p88
      %s129 = smul.u32 16, %s19
      %p130 = scmp.lt.s32.totalorder %s18, 1
      %s131 = scalar_select %p130, %s18, 1
      %p132 = scmp.lt.s32.totalorder %s129, 15
      %s133 = scalar_select %p132, %s129, 15
      %s134 = smul.addr %s133, 2
      %s135 = smul.addr %s131, 32
      %s136 = sadd.s32 %s134, %s135
      %s137 = smul.addr %s136, 8
      %s138 = scalar_lea.vmem %s3, %s137
      %s139 = smul.u32 16, %s19
      %p140 = scmp.lt.s32.totalorder %s18, 1
      %s141 = scalar_select %p140, %s18, 1
      %p142 = scmp.lt.s32.totalorder %s139, 15
      %s143 = scalar_select %p142, %s139, 15
      %s144 = smul.addr %s143, 2
      %s145 = smul.addr %s141, 32
      %s146 = sadd.s32 %s144, %s145
      %s147 = smul.addr %s146, 8
      %s148 = scalar_lea.vmem %s3, %s147
      %s149 = smul.u32 16, %s19
      %p150 = scmp.eq.s32.totalorder %s19, 0
      // Predicated region
      $region29: #{conv_bn_act_block.1} parent=27 // pred_check
        %p151 = pneg %p150
      $region30: #{conv_bn_act_block.1} parent=27 // pred_check_branch
        %153 = sbr.rel (%p151) target = $region32
      $region31: #{conv_bn_act_block.1} parent=27 // pred_region
        %s154 = smul.u32 %s18, 256
        %s155 = scalar_lea.vmem %s0, %s154
        %p157 = scmp.lt.u32.totalorder 256, 8
        %p158 = pneg %p157
        // Predicated region
        $region33: #{conv_bn_act_block.1} parent=31 // pred_check
          _
        $region34: #{conv_bn_act_block.1} parent=31 // pred_check_branch
          %160 = sbr.rel (%p157) target = $region36
        $region35: #{conv_bn_act_block.1} parent=31 // pred_region
          %s175 = sand.u32 256, 7
          %p176 = scmp.eq.s32.totalorder %s175, 0
          // Predicated region
          $region48: #{conv_bn_act_block.1} parent=35 // pred_check
            %p177 = pneg %p176
          $region49: #{conv_bn_act_block.1} parent=35 // pred_check_branch
            %179 = sbr.rel (%p177) target = $region51
          $region50: #{conv_bn_act_block.1} parent=35 // pred_region
            loop: start=0, step=1, limit=1
            $region52: #{conv_bn_act_block.1} parent=50 // loop_pre_header
              _
            $region53: #{conv_bn_act_block.1} parent=50 // loop_header
              %s181 = sphi 0, %s185
              %p182 = scmp.ge.s32.totalorder %s181, 1
              %s186 = sphi %s155, %s155
              %s187 = sphi [#allocation2], [#allocation2]
            $region54: #{conv_bn_act_block.1} parent=50 // loop_header_branch
              %184 = sbr.rel (%p182) target = $region58
            $region55: #{conv_bn_act_block.1} parent=50 // loop_body
              %v188 = vld [vmem:[%s186] sm:$0xff]
              %189 = vst [vmem:[%s187] sm:$0xff] %v188
              %v190 = vld [vmem:[%s186 + $0x8] sm:$0xff]
              %191 = vst [vmem:[%s187 + $0x8] sm:$0xff] %v190
              %v192 = vld [vmem:[%s186 + $0x10] sm:$0xff]
              %193 = vst [vmem:[%s187 + $0x10] sm:$0xff] %v192
              %v194 = vld [vmem:[%s186 + $0x18] sm:$0xff]
              %195 = vst [vmem:[%s187 + $0x18] sm:$0xff] %v194
              %v196 = vld [vmem:[%s186 + $0x20] sm:$0xff]
              %197 = vst [vmem:[%s187 + $0x20] sm:$0xff] %v196
              %v198 = vld [vmem:[%s186 + $0x28] sm:$0xff]
              %199 = vst [vmem:[%s187 + $0x28] sm:$0xff] %v198
              %v200 = vld [vmem:[%s186 + $0x30] sm:$0xff]
              %201 = vst [vmem:[%s187 + $0x30] sm:$0xff] %v200
              %v202 = vld [vmem:[%s186 + $0x38] sm:$0xff]
              %203 = vst [vmem:[%s187 + $0x38] sm:$0xff] %v202
              %v204 = vld [vmem:[%s186 + $0x40] sm:$0xff]
              %205 = vst [vmem:[%s187 + $0x40] sm:$0xff] %v204
              %v206 = vld [vmem:[%s186 + $0x48] sm:$0xff]
              %207 = vst [vmem:[%s187 + $0x48] sm:$0xff] %v206
              %v208 = vld [vmem:[%s186 + $0x50] sm:$0xff]
              %209 = vst [vmem:[%s187 + $0x50] sm:$0xff] %v208
              %v210 = vld [vmem:[%s186 + $0x58] sm:$0xff]
              %211 = vst [vmem:[%s187 + $0x58] sm:$0xff] %v210
              %v212 = vld [vmem:[%s186 + $0x60] sm:$0xff]
              %213 = vst [vmem:[%s187 + $0x60] sm:$0xff] %v212
              %v214 = vld [vmem:[%s186 + $0x68] sm:$0xff]
              %215 = vst [vmem:[%s187 + $0x68] sm:$0xff] %v214
              %v216 = vld [vmem:[%s186 + $0x70] sm:$0xff]
              %217 = vst [vmem:[%s187 + $0x70] sm:$0xff] %v216
              %v218 = vld [vmem:[%s186 + $0x78] sm:$0xff]
              %219 = vst [vmem:[%s187 + $0x78] sm:$0xff] %v218
              %v220 = vld [vmem:[%s186 + $0x80] sm:$0xff]
              %221 = vst [vmem:[%s187 + $0x80] sm:$0xff] %v220
              %v222 = vld [vmem:[%s186 + $0x88] sm:$0xff]
              %223 = vst [vmem:[%s187 + $0x88] sm:$0xff] %v222
              %v224 = vld [vmem:[%s186 + $0x90] sm:$0xff]
              %225 = vst [vmem:[%s187 + $0x90] sm:$0xff] %v224
              %v226 = vld [vmem:[%s186 + $0x98] sm:$0xff]
              %227 = vst [vmem:[%s187 + $0x98] sm:$0xff] %v226
              %v228 = vld [vmem:[%s186 + $0xa0] sm:$0xff]
              %229 = vst [vmem:[%s187 + $0xa0] sm:$0xff] %v228
              %v230 = vld [vmem:[%s186 + $0xa8] sm:$0xff]
              %231 = vst [vmem:[%s187 + $0xa8] sm:$0xff] %v230
              %v232 = vld [vmem:[%s186 + $0xb0] sm:$0xff]
              %233 = vst [vmem:[%s187 + $0xb0] sm:$0xff] %v232
              %v234 = vld [vmem:[%s186 + $0xb8] sm:$0xff]
              %235 = vst [vmem:[%s187 + $0xb8] sm:$0xff] %v234
              %v236 = vld [vmem:[%s186 + $0xc0] sm:$0xff]
              %237 = vst [vmem:[%s187 + $0xc0] sm:$0xff] %v236
              %v238 = vld [vmem:[%s186 + $0xc8] sm:$0xff]
              %239 = vst [vmem:[%s187 + $0xc8] sm:$0xff] %v238
              %v240 = vld [vmem:[%s186 + $0xd0] sm:$0xff]
              %241 = vst [vmem:[%s187 + $0xd0] sm:$0xff] %v240
              %v242 = vld [vmem:[%s186 + $0xd8] sm:$0xff]
              %243 = vst [vmem:[%s187 + $0xd8] sm:$0xff] %v242
              %v244 = vld [vmem:[%s186 + $0xe0] sm:$0xff]
              %245 = vst [vmem:[%s187 + $0xe0] sm:$0xff] %v244
              %v246 = vld [vmem:[%s186 + $0xe8] sm:$0xff]
              %247 = vst [vmem:[%s187 + $0xe8] sm:$0xff] %v246
              %v248 = vld [vmem:[%s186 + $0xf0] sm:$0xff]
              %249 = vst [vmem:[%s187 + $0xf0] sm:$0xff] %v248
              %v250 = vld [vmem:[%s186 + $0xf8] sm:$0xff]
              %251 = vst [vmem:[%s187 + $0xf8] sm:$0xff] %v250
            $region56: #{conv_bn_act_block.1} parent=50 // loop_footer
              %s185 = sadd.s32 1, %s181
            $region57: #{conv_bn_act_block.1} parent=50 // loop_footer_branch
              %180 = sbr.rel target = $region53
            $region58: #{conv_bn_act_block.1} parent=50 // loop_exit
              _
          $region51: #{conv_bn_act_block.1} parent=35 // pred_fallthru
            _
          %p252 = pneg %p176
          // Predicated region
          $region59: #{conv_bn_act_block.1} parent=35 // pred_check
            _
          $region60: #{conv_bn_act_block.1} parent=35 // pred_check_branch
            %254 = sbr.rel (%p176) target = $region62
          $region61: #{conv_bn_act_block.1} parent=35 // pred_region
            %s255 = sand.u32 256, 7
          $region62: #{conv_bn_act_block.1} parent=35 // pred_fallthru
            _
        $region36: #{conv_bn_act_block.1} parent=31 // pred_fallthru
          _
        // Predicated region
        $region37: #{conv_bn_act_block.1} parent=31 // pred_check
          %p161 = pneg %p157
        $region38: #{conv_bn_act_block.1} parent=31 // pred_check_branch
          %163 = sbr.rel (%p161) target = $region40
        $region39: #{conv_bn_act_block.1} parent=31 // pred_region
          %s164 = sshllo.u32 0, 256
          loop: start=0, step=1, limit=1
          $region41: #{conv_bn_act_block.1} parent=39 // loop_pre_header
            _
          $region42: #{conv_bn_act_block.1} parent=39 // loop_header
            %s166 = sphi 0, %s170
            %p167 = scmp.ge.s32.totalorder %s166, 1
            %s171 = sphi %s155, %s155
            %s172 = sphi [#allocation2], [#allocation2]
          $region43: #{conv_bn_act_block.1} parent=39 // loop_header_branch
            %169 = sbr.rel (%p167) target = $region47
          $region44: #{conv_bn_act_block.1} parent=39 // loop_body
            %v173 = vld [vmem:[%s171] sm:%s164]
            %174 = vst [vmem:[%s172] sm:%s164] %v173
          $region45: #{conv_bn_act_block.1} parent=39 // loop_footer
            %s170 = sadd.s32 1, %s166
          $region46: #{conv_bn_act_block.1} parent=39 // loop_footer_branch
            %165 = sbr.rel target = $region42
          $region47: #{conv_bn_act_block.1} parent=39 // loop_exit
            _
        $region40: #{conv_bn_act_block.1} parent=31 // pred_fallthru
          _
        // Predicated region
        $region63: #{conv_bn_act_block.1} parent=31 // pred_check
          _
        $region64: #{conv_bn_act_block.1} parent=31 // pred_check_branch
          %258 = sbr.rel (0) target = $region66
        $region65: #{conv_bn_act_block.1} parent=31 // pred_region
          %259 = vsyncadd [#allocation3], 4096
        $region66: #{conv_bn_act_block.1} parent=31 // pred_fallthru
          _
      $region32: #{conv_bn_act_block.1} parent=27 // pred_fallthru
        _
      %p260 = scmp.lt.s32.totalorder %s19, 0
      %s261 = ssub.s32 0, %s19
      %s262 = scalar_select %p260, %s261, %s19
      %s263 = sand.u32 %s262, 1
      %s264 = ssub.s32 0, %s263
      %s265 = scalar_select %p260, %s264, %s263
      %p266 = scmp.ne.s32.totalorder %s265, 0
      %p267 = scmp.lt.s32.totalorder %s265, 0
      %p268 = pnand %p267, %p266
      %p269 = pneg %p268
      %s270 = sadd.s32 %s265, 2
      %s271 = scalar_select %p269, %s270, %s265
      %s272 = smul.u32 %s271, 256
      %s273 = scalar_lea.vmem [#allocation2], %s272
      %s274 = scalar_lea.sflag [#allocation3], %s271
      %s275 = smul.u32 16, 16
      %s276 = smul.u32 %s275, 1
      %s277 = sshll.u32 %s276, 4
      %278 = dma.done %s274, %s277
      %v279 = vld [vmem:[%s2] sm:$0x1]
      %v280 = vld [vmem:[%s273] sm:$0xff]
      %v281 = vld [vmem:[%s273 + $0x8] sm:$0xff]
      %v282 = vld [vmem:[%s273 + $0x10] sm:$0xff]
      %v283 = vld [vmem:[%s273 + $0x18] sm:$0xff]
      %v284 = vld [vmem:[%s273 + $0x20] sm:$0xff]
      %v285 = vld [vmem:[%s273 + $0x28] sm:$0xff]
      %v286 = vld [vmem:[%s273 + $0x30] sm:$0xff]
      %v287 = vld [vmem:[%s273 + $0x38] sm:$0xff]
      %v288 = vld [vmem:[%s273 + $0x40] sm:$0xff]
      %v289 = vld [vmem:[%s273 + $0x48] sm:$0xff]
      %v290 = vld [vmem:[%s273 + $0x50] sm:$0xff]
      %v291 = vld [vmem:[%s273 + $0x58] sm:$0xff]
      %v292 = vld [vmem:[%s273 + $0x60] sm:$0xff]
      %v293 = vld [vmem:[%s273 + $0x68] sm:$0xff]
      %v294 = vld [vmem:[%s273 + $0x70] sm:$0xff]
      %v295 = vld [vmem:[%s273 + $0x78] sm:$0xff]
      %v296 = vld [vmem:[%s273 + $0x80] sm:$0xff]
      %v297 = vld [vmem:[%s273 + $0x88] sm:$0xff]
      %v298 = vld [vmem:[%s273 + $0x90] sm:$0xff]
      %v299 = vld [vmem:[%s273 + $0x98] sm:$0xff]
      %v300 = vld [vmem:[%s273 + $0xa0] sm:$0xff]
      %v301 = vld [vmem:[%s273 + $0xa8] sm:$0xff]
      %v302 = vld [vmem:[%s273 + $0xb0] sm:$0xff]
      %v303 = vld [vmem:[%s273 + $0xb8] sm:$0xff]
      %v304 = vld [vmem:[%s273 + $0xc0] sm:$0xff]
      %v305 = vld [vmem:[%s273 + $0xc8] sm:$0xff]
      %v306 = vld [vmem:[%s273 + $0xd0] sm:$0xff]
      %v307 = vld [vmem:[%s273 + $0xd8] sm:$0xff]
      %v308 = vld [vmem:[%s273 + $0xe0] sm:$0xff]
      %v309 = vld [vmem:[%s273 + $0xe8] sm:$0xff]
      %v310 = vld [vmem:[%s273 + $0xf0] sm:$0xff]
      %v311 = vld [vmem:[%s273 + $0xf8] sm:$0xff]
      %v312 = vld [vmem:[%s1] sm:$0xff]
      %v313 = vld [vmem:[%s1 + $0x8] sm:$0xff]
      %v314 = vld [vmem:[%s1 + $0x10] sm:$0xff]
      %v315 = vld [vmem:[%s1 + $0x18] sm:$0xff]
      %v316 = vld [vmem:[%s1 + $0x20] sm:$0xff]
      %v317 = vld [vmem:[%s1 + $0x28] sm:$0xff]
      %v318 = vld [vmem:[%s1 + $0x30] sm:$0xff]
      %v319 = vld [vmem:[%s1 + $0x38] sm:$0xff]
      %v320 = vld [vmem:[%s1 + $0x40] sm:$0xff]
      %v321 = vld [vmem:[%s1 + $0x48] sm:$0xff]
      %v322 = vld [vmem:[%s1 + $0x50] sm:$0xff]
      %v323 = vld [vmem:[%s1 + $0x58] sm:$0xff]
      %v324 = vld [vmem:[%s1 + $0x60] sm:$0xff]
      %v325 = vld [vmem:[%s1 + $0x68] sm:$0xff]
      %v326 = vld [vmem:[%s1 + $0x70] sm:$0xff]
      %v327 = vld [vmem:[%s1 + $0x78] sm:$0xff]
      %v329 = vlaneseq
      %v330 = vshrl.u32 %v329, 7
      %v331 = vsub.s32 0, %v330
      %v332 = vrot.slane %v279, %v331
      %334 = vmatprep.subr.mxu0 0.0
      %335 = vmatpush1.msra.mxu0 %v312
      %336 = vmatprep.subr.mxu0 0.0
      %337 = vmatpush1.msra.mxu0 %v313
      %338 = vmatprep.subr.mxu0 0.0
      %339 = vmatpush1.msra.mxu0 %v314
      %340 = vmatprep.subr.mxu0 0.0
      %341 = vmatpush1.msra.mxu0 %v315
      %342 = vmatprep.subr.mxu0 0.0
      %343 = vmatpush1.msra.mxu0 %v316
      %344 = vmatprep.subr.mxu0 0.0
      %345 = vmatpush1.msra.mxu0 %v317
      %346 = vmatprep.subr.mxu0 0.0
      %347 = vmatpush1.msra.mxu0 %v318
      %348 = vmatprep.subr.mxu0 0.0
      %349 = vmatpush1.msra.mxu0 %v319
      %350 = vmatprep.subr.mxu0 0.0
      %351 = vmatpush1.msra.mxu0 %v320
      %352 = vmatprep.subr.mxu0 0.0
      %353 = vmatpush1.msra.mxu0 %v321
      %354 = vmatprep.subr.mxu0 0.0
      %355 = vmatpush1.msra.mxu0 %v322
      %356 = vmatprep.subr.mxu0 0.0
      %357 = vmatpush1.msra.mxu0 %v323
      %358 = vmatprep.subr.mxu0 0.0
      %359 = vmatpush1.msra.mxu0 %v324
      %360 = vmatprep.subr.mxu0 0.0
      %361 = vmatpush1.msra.mxu0 %v325
      %362 = vmatprep.subr.mxu0 0.0
      %363 = vmatpush1.msra.mxu0 %v326
      %364 = vmatprep.subr.mxu0 0.0
      %365 = vmatpush1.msra.mxu0 %v327
      %366 = vmatprep.subr.mxu0 0.0
      %367 = vmatpush1.msra.mxu0 0.0
      %368 = vmatprep.subr.mxu0 0.0
      %369 = vmatpush1.msra.mxu0 0.0
      %370 = vmatprep.subr.mxu0 0.0
      %371 = vmatpush1.msra.mxu0 0.0
      %372 = vmatprep.subr.mxu0 0.0
      %373 = vmatpush1.msra.mxu0 0.0
      %374 = vmatprep.subr.mxu0 0.0
      %375 = vmatpush1.msra.mxu0 0.0
      %376 = vmatprep.subr.mxu0 0.0
      %377 = vmatpush1.msra.mxu0 0.0
      %378 = vmatprep.subr.mxu0 0.0
      %379 = vmatpush1.msra.mxu0 0.0
      %380 = vmatprep.subr.mxu0 0.0
      %381 = vmatpush1.msra.mxu0 0.0
      %382 = vmatprep.subr.mxu0 0.0
      %383 = vmatpush1.msra.mxu0 0.0
      %384 = vmatprep.subr.mxu0 0.0
      %385 = vmatpush1.msra.mxu0 0.0
      %386 = vmatprep.subr.mxu0 0.0
      %387 = vmatpush1.msra.mxu0 0.0
      %388 = vmatprep.subr.mxu0 0.0
      %389 = vmatpush1.msra.mxu0 0.0
      %390 = vmatprep.subr.mxu0 0.0
      %391 = vmatpush1.msra.mxu0 0.0
      %392 = vmatprep.subr.mxu0 0.0
      %393 = vmatpush1.msra.mxu0 0.0
      %394 = vmatprep.subr.mxu0 0.0
      %395 = vmatpush1.msra.mxu0 0.0
      %396 = vmatprep.subr.mxu0 0.0
      %397 = vmatpush1.msra.mxu0 0.0
      %398 = vmatprep.mubr.f32.mxu0 0.0
      %399 = vmatmul.mubr.f32.gmra.mrb[0].mxu0 %v280
      %v400 = vpop.f32.mrb[0].mxu0
      %v401 = vadd.f32 %v332, %v400
      %v402 = vpop.f32.mrb[0].mxu0
      %403 = vmatprep.mubr.f32.mxu0 0.0
      %404 = vmatmul.mubr.f32.gmra.mrb[0].mxu0 %v281
      %v405 = vpop.f32.mrb[0].mxu0
      %v406 = vadd.f32 %v332, %v405
      %v407 = vpop.f32.mrb[0].mxu0
      %408 = vmatprep.mubr.f32.mxu0 0.0
      %409 = vmatmul.mubr.f32.gmra.mrb[0].mxu0 %v282
      %v410 = vpop.f32.mrb[0].mxu0
      %v411 = vadd.f32 %v332, %v410
      %v412 = vpop.f32.mrb[0].mxu0
      %413 = vmatprep.mubr.f32.mxu0 0.0
      %414 = vmatmul.mubr.f32.gmra.mrb[0].mxu0 %v283
      %v415 = vpop.f32.mrb[0].mxu0
      %v416 = vadd.f32 %v332, %v415
      %v417 = vpop.f32.mrb[0].mxu0
      %418 = vmatprep.mubr.f32.mxu0 0.0
      %419 = vmatmul.mubr.f32.gmra.mrb[0].mxu0 %v284
      %v420 = vpop.f32.mrb[0].mxu0
      %v421 = vadd.f32 %v332, %v420
      %v422 = vpop.f32.mrb[0].mxu0
      %423 = vmatprep.mubr.f32.mxu0 0.0
      %424 = vmatmul.mubr.f32.gmra.mrb[0].mxu0 %v285
      %v425 = vpop.f32.mrb[0].mxu0
      %v426 = vadd.f32 %v332, %v425
      %v427 = vpop.f32.mrb[0].mxu0
      %428 = vmatprep.mubr.f32.mxu0 0.0
      %429 = vmatmul.mubr.f32.gmra.mrb[0].mxu0 %v286
      %v430 = vpop.f32.mrb[0].mxu0
      %v431 = vadd.f32 %v332, %v430
      %v432 = vpop.f32.mrb[0].mxu0
      %433 = vmatprep.mubr.f32.mxu0 0.0
      %434 = vmatmul.mubr.f32.gmra.mrb[0].mxu0 %v287
      %v435 = vpop.f32.mrb[0].mxu0
      %v436 = vadd.f32 %v332, %v435
      %v437 = vpop.f32.mrb[0].mxu0
      %438 = vmatprep.mubr.f32.mxu0 0.0
      %439 = vmatmul.mubr.f32.gmra.mrb[0].mxu0 %v288
      %v440 = vpop.f32.mrb[0].mxu0
      %v441 = vadd.f32 %v332, %v440
      %v442 = vpop.f32.mrb[0].mxu0
      %443 = vmatprep.mubr.f32.mxu0 0.0
      %444 = vmatmul.mubr.f32.gmra.mrb[0].mxu0 %v289
      %v445 = vpop.f32.mrb[0].mxu0
      %v446 = vadd.f32 %v332, %v445
      %v447 = vpop.f32.mrb[0].mxu0
      %448 = vmatprep.mubr.f32.mxu0 0.0
      %449 = vmatmul.mubr.f32.gmra.mrb[0].mxu0 %v290
      %v450 = vpop.f32.mrb[0].mxu0
      %v451 = vadd.f32 %v332, %v450
      %v452 = vpop.f32.mrb[0].mxu0
      %453 = vmatprep.mubr.f32.mxu0 0.0
      %454 = vmatmul.mubr.f32.gmra.mrb[0].mxu0 %v291
      %v455 = vpop.f32.mrb[0].mxu0
      %v456 = vadd.f32 %v332, %v455
      %v457 = vpop.f32.mrb[0].mxu0
      %458 = vmatprep.mubr.f32.mxu0 0.0
      %459 = vmatmul.mubr.f32.gmra.mrb[0].mxu0 %v292
      %v460 = vpop.f32.mrb[0].mxu0
      %v461 = vadd.f32 %v332, %v460
      %v462 = vpop.f32.mrb[0].mxu0
      %463 = vmatprep.mubr.f32.mxu0 0.0
      %464 = vmatmul.mubr.f32.gmra.mrb[0].mxu0 %v293
      %v465 = vpop.f32.mrb[0].mxu0
      %v466 = vadd.f32 %v332, %v465
      %v467 = vpop.f32.mrb[0].mxu0
      %468 = vmatprep.mubr.f32.mxu0 0.0
      %469 = vmatmul.mubr.f32.gmra.mrb[0].mxu0 %v294
      %v470 = vpop.f32.mrb[0].mxu0
      %v471 = vadd.f32 %v332, %v470
      %v472 = vpop.f32.mrb[0].mxu0
      %473 = vmatprep.mubr.f32.mxu0 0.0
      %474 = vmatmul.mubr.f32.gmra.mrb[0].mxu0 %v295
      %v475 = vpop.f32.mrb[0].mxu0
      %v476 = vadd.f32 %v332, %v475
      %v477 = vpop.f32.mrb[0].mxu0
      %478 = vmatprep.mubr.f32.mxu0 0.0
      %479 = vmatmul.mubr.f32.gmra.mrb[0].mxu0 %v296
      %v480 = vpop.f32.mrb[0].mxu0
      %v481 = vadd.f32 %v332, %v480
      %v482 = vpop.f32.mrb[0].mxu0
      %483 = vmatprep.mubr.f32.mxu0 0.0
      %484 = vmatmul.mubr.f32.gmra.mrb[0].mxu0 %v297
      %v485 = vpop.f32.mrb[0].mxu0
      %v486 = vadd.f32 %v332, %v485
      %v487 = vpop.f32.mrb[0].mxu0
      %488 = vmatprep.mubr.f32.mxu0 0.0
      %489 = vmatmul.mubr.f32.gmra.mrb[0].mxu0 %v298
      %v490 = vpop.f32.mrb[0].mxu0
      %v491 = vadd.f32 %v332, %v490
      %v492 = vpop.f32.mrb[0].mxu0
      %493 = vmatprep.mubr.f32.mxu0 0.0
      %494 = vmatmul.mubr.f32.gmra.mrb[0].mxu0 %v299
      %v495 = vpop.f32.mrb[0].mxu0
      %v496 = vadd.f32 %v332, %v495
      %v497 = vpop.f32.mrb[0].mxu0
      %498 = vmatprep.mubr.f32.mxu0 0.0
      %499 = vmatmul.mubr.f32.gmra.mrb[0].mxu0 %v300
      %v500 = vpop.f32.mrb[0].mxu0
      %v501 = vadd.f32 %v332, %v500
      %v502 = vpop.f32.mrb[0].mxu0
      %503 = vmatprep.mubr.f32.mxu0 0.0
      %504 = vmatmul.mubr.f32.gmra.mrb[0].mxu0 %v301
      %v505 = vpop.f32.mrb[0].mxu0
      %v506 = vadd.f32 %v332, %v505
      %v507 = vpop.f32.mrb[0].mxu0
      %508 = vmatprep.mubr.f32.mxu0 0.0
      %509 = vmatmul.mubr.f32.gmra.mrb[0].mxu0 %v302
      %v510 = vpop.f32.mrb[0].mxu0
      %v511 = vadd.f32 %v332, %v510
      %v512 = vpop.f32.mrb[0].mxu0
      %513 = vmatprep.mubr.f32.mxu0 0.0
      %514 = vmatmul.mubr.f32.gmra.mrb[0].mxu0 %v303
      %v515 = vpop.f32.mrb[0].mxu0
      %v516 = vadd.f32 %v332, %v515
      %v517 = vpop.f32.mrb[0].mxu0
      %518 = vmatprep.mubr.f32.mxu0 0.0
      %519 = vmatmul.mubr.f32.gmra.mrb[0].mxu0 %v304
      %v520 = vpop.f32.mrb[0].mxu0
      %v521 = vadd.f32 %v332, %v520
      %v522 = vpop.f32.mrb[0].mxu0
      %523 = vmatprep.mubr.f32.mxu0 0.0
      %524 = vmatmul.mubr.f32.gmra.mrb[0].mxu0 %v305
      %v525 = vpop.f32.mrb[0].mxu0
      %v526 = vadd.f32 %v332, %v525
      %v527 = vpop.f32.mrb[0].mxu0
      %528 = vmatprep.mubr.f32.mxu0 0.0
      %529 = vmatmul.mubr.f32.gmra.mrb[0].mxu0 %v306
      %v530 = vpop.f32.mrb[0].mxu0
      %v531 = vadd.f32 %v332, %v530
      %v532 = vpop.f32.mrb[0].mxu0
      %533 = vmatprep.mubr.f32.mxu0 0.0
      %534 = vmatmul.mubr.f32.gmra.mrb[0].mxu0 %v307
      %v535 = vpop.f32.mrb[0].mxu0
      %v536 = vadd.f32 %v332, %v535
      %v537 = vpop.f32.mrb[0].mxu0
      %538 = vmatprep.mubr.f32.mxu0 0.0
      %539 = vmatmul.mubr.f32.gmra.mrb[0].mxu0 %v308
      %v540 = vpop.f32.mrb[0].mxu0
      %v541 = vadd.f32 %v332, %v540
      %v542 = vpop.f32.mrb[0].mxu0
      %543 = vmatprep.mubr.f32.mxu0 0.0
      %544 = vmatmul.mubr.f32.gmra.mrb[0].mxu0 %v309
      %v545 = vpop.f32.mrb[0].mxu0
      %v546 = vadd.f32 %v332, %v545
      %v547 = vpop.f32.mrb[0].mxu0
      %548 = vmatprep.mubr.f32.mxu0 0.0
      %549 = vmatmul.mubr.f32.gmra.mrb[0].mxu0 %v310
      %v550 = vpop.f32.mrb[0].mxu0
      %v551 = vadd.f32 %v332, %v550
      %v552 = vpop.f32.mrb[0].mxu0
      %553 = vmatprep.mubr.f32.mxu0 0.0
      %554 = vmatmul.mubr.f32.gmra.mrb[0].mxu0 %v311
      %v555 = vpop.f32.mrb[0].mxu0
      %v556 = vadd.f32 %v332, %v555
      %v557 = vpop.f32.mrb[0].mxu0
      %558 = vdwg.mxu0
      %v559 = vmax.f32 %v401, 0.0
      %v560 = vmax.f32 %v406, 0.0
      %v561 = vmax.f32 %v411, 0.0
      %v562 = vmax.f32 %v416, 0.0
      %v563 = vmax.f32 %v421, 0.0
      %v564 = vmax.f32 %v426, 0.0
      %v565 = vmax.f32 %v431, 0.0
      %v566 = vmax.f32 %v436, 0.0
      %v567 = vmax.f32 %v441, 0.0
      %v568 = vmax.f32 %v446, 0.0
      %v569 = vmax.f32 %v451, 0.0
      %v570 = vmax.f32 %v456, 0.0
      %v571 = vmax.f32 %v461, 0.0
      %v572 = vmax.f32 %v466, 0.0
      %v573 = vmax.f32 %v471, 0.0
      %v574 = vmax.f32 %v476, 0.0
      %v575 = vmax.f32 %v481, 0.0
      %v576 = vmax.f32 %v486, 0.0
      %v577 = vmax.f32 %v491, 0.0
      %v578 = vmax.f32 %v496, 0.0
      %v579 = vmax.f32 %v501, 0.0
      %v580 = vmax.f32 %v506, 0.0
      %v581 = vmax.f32 %v511, 0.0
      %v582 = vmax.f32 %v516, 0.0
      %v583 = vmax.f32 %v521, 0.0
      %v584 = vmax.f32 %v526, 0.0
      %v585 = vmax.f32 %v531, 0.0
      %v586 = vmax.f32 %v536, 0.0
      %v587 = vmax.f32 %v541, 0.0
      %v588 = vmax.f32 %v546, 0.0
      %v589 = vmax.f32 %v551, 0.0
      %v590 = vmax.f32 %v556, 0.0
      %591 = vst [vmem:[%s148] sm:$0xff] %v559
      %592 = vst [vmem:[%s148 + $0x8] sm:$0xff] %v560
      %593 = vst [vmem:[%s148 + $0x10] sm:$0xff] %v561
      %594 = vst [vmem:[%s148 + $0x18] sm:$0xff] %v562
      %595 = vst [vmem:[%s148 + $0x20] sm:$0xff] %v563
      %596 = vst [vmem:[%s148 + $0x28] sm:$0xff] %v564
      %597 = vst [vmem:[%s148 + $0x30] sm:$0xff] %v565
      %598 = vst [vmem:[%s148 + $0x38] sm:$0xff] %v566
      %599 = vst [vmem:[%s148 + $0x40] sm:$0xff] %v567
      %600 = vst [vmem:[%s148 + $0x48] sm:$0xff] %v568
      %601 = vst [vmem:[%s148 + $0x50] sm:$0xff] %v569
      %602 = vst [vmem:[%s148 + $0x58] sm:$0xff] %v570
      %603 = vst [vmem:[%s148 + $0x60] sm:$0xff] %v571
      %604 = vst [vmem:[%s148 + $0x68] sm:$0xff] %v572
      %605 = vst [vmem:[%s148 + $0x70] sm:$0xff] %v573
      %606 = vst [vmem:[%s148 + $0x78] sm:$0xff] %v574
      %607 = vst [vmem:[%s148 + $0x80] sm:$0xff] %v575
      %608 = vst [vmem:[%s148 + $0x88] sm:$0xff] %v576
      %609 = vst [vmem:[%s148 + $0x90] sm:$0xff] %v577
      %610 = vst [vmem:[%s148 + $0x98] sm:$0xff] %v578
      %611 = vst [vmem:[%s148 + $0xa0] sm:$0xff] %v579
      %612 = vst [vmem:[%s148 + $0xa8] sm:$0xff] %v580
      %613 = vst [vmem:[%s148 + $0xb0] sm:$0xff] %v581
      %614 = vst [vmem:[%s148 + $0xb8] sm:$0xff] %v582
      %615 = vst [vmem:[%s148 + $0xc0] sm:$0xff] %v583
      %616 = vst [vmem:[%s148 + $0xc8] sm:$0xff] %v584
      %617 = vst [vmem:[%s148 + $0xd0] sm:$0xff] %v585
      %618 = vst [vmem:[%s148 + $0xd8] sm:$0xff] %v586
      %619 = vst [vmem:[%s148 + $0xe0] sm:$0xff] %v587
      %620 = vst [vmem:[%s148 + $0xe8] sm:$0xff] %v588
      %621 = vst [vmem:[%s148 + $0xf0] sm:$0xff] %v589
      %622 = vst [vmem:[%s148 + $0xf8] sm:$0xff] %v590
      %s623 = smul.u32 16, %s19
      %p624 = scmp.lt.s32.totalorder %s18, 1
      %s625 = scalar_select %p624, %s18, 1
      %p626 = scmp.lt.s32.totalorder %s623, 15
      %s627 = scalar_select %p626, %s623, 15
      %s628 = smul.addr %s627, 2
      %s629 = smul.addr %s625, 32
      %s630 = sadd.s32 %s628, %s629
      %s631 = smul.addr %s630, 8
      %s632 = scalar_lea.vmem %s3, %s631
      // Predicated region
      $region67: #{conv_bn_act_block.1} parent=27 // pred_check
        %p633 = pneg %p88
      $region68: #{conv_bn_act_block.1} parent=27 // pred_check_branch
        %635 = sbr.rel (%p633) target = $region70
      $region69: #{conv_bn_act_block.1} parent=27 // pred_region
        %s636 = smul.u32 16, %s19
      $region70: #{conv_bn_act_block.1} parent=27 // pred_fallthru
        _
    $region28: #{conv_bn_act_block.1} parent=5 // pred_fallthru
      _
    %p637 = scmp.le.s32.totalorder 2, %s9
    // Predicated region
    $region71: #{conv_bn_act_block.1} parent=5 // pred_check
      %p638 = pneg %p637
    $region72: #{conv_bn_act_block.1} parent=5 // pred_check_branch
      %640 = sbr.rel (%p638) target = $region74
    $region73: #{conv_bn_act_block.1} parent=5 // pred_region
      %s641 = ssub.s32 %s9, 2
      // Predicated region
      $region75: #{conv_bn_act_block.1} parent=73 // pred_check
        %p642 = pneg %p94
      $region76: #{conv_bn_act_block.1} parent=73 // pred_check_branch
        %644 = sbr.rel (%p642) target = $region78
      $region77: #{conv_bn_act_block.1} parent=73 // pred_region
        %s645 = smul.u32 16, %s21
        %p646 = scmp.lt.s32.totalorder %s20, 1
        %s647 = scalar_select %p646, %s20, 1
        %p648 = scmp.lt.s32.totalorder %s645, 15
        %s649 = scalar_select %p648, %s645, 15
        %s650 = smul.addr %s649, 2
        %s651 = smul.addr %s647, 32
        %s652 = sadd.s32 %s650, %s651
        %s653 = smul.addr %s652, 8
        %s654 = scalar_lea.vmem %s3, %s653
      $region78: #{conv_bn_act_block.1} parent=73 // pred_fallthru
        _
    $region74: #{conv_bn_act_block.1} parent=5 // pred_fallthru
      _
  $region6: #{conv_bn_act_block.1} parent=0 // loop_footer
    %s13 = sadd.s32 1, %s9
  $region7: #{conv_bn_act_block.1} parent=0 // loop_footer_branch
    %8 = sbr.rel target = $region3
  $region8: #{conv_bn_act_block.1} parent=0 // loop_exit
    _
  %655 = vsyncmov [#allocation3]
  %s656 = vpop.sfrf %655
  %p657 = scmp.eq.s32.totalorder %s656, 0
  %p658 = pneg %p657
  %660 = shalt.err (%p658)
  %s661 = scalar_lea.sflag [#allocation3], 1
  %662 = vsyncmov %s661
  %s663 = vpop.sfrf %662
  %p664 = scmp.eq.s32.totalorder %s663, 0
  %p665 = pneg %p664
  %667 = shalt.err (%p665)

</llo_original>
